<compile_context>
chip_gen: v5e
topology: v5e:2x2
jax: 0.10.0
libtpu: 0.0.40
codegen_flags: <defaults>
</compile_context>

<pallas_src>
import functools
import math

import jax
import jax.numpy as jnp
from jax.experimental import pallas as pl
from jax.experimental.pallas import tpu as pltpu

BN_EPS = 1e-5
LANE = 128                      # channel padding granularity (lane width)
TM_DEFAULT = 512                # matmul row tile; v5e: ~256, v7x: keep <=512
VMEM_LIMIT_BYTES = 48 * 1024 * 1024   # <= v7x physical (64 MiB), > 32 MiB default


def _make_divisible(ch, divisor=8, min_ch=None):
    if min_ch is None:
        min_ch = divisor
    new_ch = max(min_ch, int(ch + divisor / 2) // divisor * divisor)
    if new_ch < 0.9 * ch:
        new_ch += divisor
    return new_ch


def _round_up(x, m):
    return ((x + m - 1) // m) * m


def _cpad(c):
    return _round_up(c, LANE)


def _pad2(x, shape):
    return jnp.pad(x, [(0, s - d) for d, s in zip(x.shape, shape)])


# ----------------------------- Pallas kernels -----------------------------

def _mm_bn_act_kernel(x_ref, w_ref, s_ref, b_ref, o_ref, *, relu6):
    # (TM, K) @ (K, N) on the MXU (bf16 in, f32 accumulate), fused BN (+ReLU6).
    y = jnp.dot(x_ref[...], w_ref[...], preferred_element_type=jnp.float32)
    y = y * s_ref[...] + b_ref[...]
    if relu6:
        y = jnp.clip(y, 0.0, 6.0)
    o_ref[...] = y.astype(o_ref.dtype)


def _mm_bn_res_kernel(x_ref, w_ref, s_ref, b_ref, r_ref, o_ref):
    # Linear-bottleneck projection matmul + BN + fused residual add.
    y = jnp.dot(x_ref[...], w_ref[...], preferred_element_type=jnp.float32)
    y = y * s_ref[...] + b_ref[...] + r_ref[...].astype(jnp.float32)
    o_ref[...] = y.astype(o_ref.dtype)


def _dw_s1_kernel(x_ref, w_ref, s_ref, b_ref, o_ref):
    # Depthwise 3x3 stride 1 on a pre-padded (1, H+2, W+2, TC) channel tile.
    # Nine shifted-slice MACs on the VPU; math in f32, I/O in bf16.
    H, W, C = o_ref.shape[1], o_ref.shape[2], o_ref.shape[3]
    x = x_ref[0]                                # (H+2, W+2, TC) bf16
    w = w_ref[...].astype(jnp.float32)          # (9, TC), loaded/cast once
    acc = jnp.zeros((H, W, C), jnp.float32)
    for kh in range(3):
        for kw in range(3):
            acc = acc + x[kh:kh + H, kw:kw + W, :].astype(jnp.float32) * w[kh * 3 + kw]
    y = acc * s_ref[0] + b_ref[0]
    o_ref[0] = jnp.clip(y, 0.0, 6.0).astype(o_ref.dtype)


def _dw_s2_kernel(x_ref, w_ref, s_ref, b_ref, o_ref):
    # Depthwise 3x3 stride 2. Input arrives in polyphase layout
    # x[a, p, b, q*C:(q+1)*C] == padded_input[2a+p, 2b+q, :], so every tap is a
    # unit-stride slice (rows) + a static parity index + a 128-aligned lane
    # slice. Only the Ho x Wo needed outputs are computed and stored.
    Ho, Wo, C = o_ref.shape[1], o_ref.shape[2], o_ref.shape[3]
    x = x_ref[0]                                # ((H+2)/2, 2, (W+2)/2, 2C) bf16
    w = w_ref[...].astype(jnp.float32)          # (9, C)
    acc = jnp.zeros((Ho, Wo, C), jnp.float32)
    for kh in range(3):
        a0, p = kh // 2, kh % 2
        for kw in range(3):
            b0, q = kw // 2, kw % 2
            tap = x[a0:a0 + Ho, p, b0:b0 + Wo, q * C:(q + 1) * C]
            acc = acc + tap.astype(jnp.float32) * w[kh * 3 + kw]
    y = acc * s_ref[0] + b_ref[0]
    o_ref[0] = jnp.clip(y, 0.0, 6.0).astype(o_ref.dtype)


def _avgpool_kernel(x_ref, o_ref):
    # Global average pool over the flattened spatial axis (tiny tail op).
    o_ref[...] = jnp.mean(x_ref[...].astype(jnp.float32), axis=1).astype(o_ref.dtype)


# ----------------------------- kernel wrappers -----------------------------

def matmul_bn_act(x, w, scale, bias, *, relu6, residual=None,
                  out_dtype=jnp.bfloat16, tm=TM_DEFAULT):
    M, K = x.shape
    N = w.shape[1]
    Mp = _round_up(max(M, 8), 8)
    tm = min(tm, Mp)
    Mp = _round_up(Mp, tm)

    x = x.astype(jnp.bfloat16)
    if Mp != M:
        x = jnp.pad(x, ((0, Mp - M), (0, 0)))
    s2 = scale.reshape(1, N).astype(jnp.float32)
    b2 = bias.reshape(1, N).astype(jnp.float32)

    in_specs = [pl.BlockSpec((tm, K), lambda i: (i, 0)),
                pl.BlockSpec((K, N), lambda i: (0, 0)),
                pl.BlockSpec((1, N), lambda i: (0, 0)),
                pl.BlockSpec((1, N), lambda i: (0, 0))]
    args = [x, w, s2, b2]
    if residual is None:
        kernel = functools.partial(_mm_bn_act_kernel, relu6=relu6)
    else:
        kernel = _mm_bn_res_kernel
        r = residual.astype(jnp.bfloat16)
        if Mp != M:
            r = jnp.pad(r, ((0, Mp - M), (0, 0)))
        in_specs.append(pl.BlockSpec((tm, N), lambda i: (i, 0)))
        args.append(r)

    out = pl.pallas_call(
        kernel,
        out_shape=jax.ShapeDtypeStruct((Mp, N), out_dtype),
        grid=(Mp // tm,),
        in_specs=in_specs,
        out_specs=pl.BlockSpec((tm, N), lambda i: (i, 0)),
        compiler_params=pltpu.CompilerParams(
            dimension_semantics=("parallel",),
            vmem_limit_bytes=VMEM_LIMIT_BYTES),
    )(*args)
    return out if Mp == M else out[:M]


def pointwise_conv(x, w, scale, bias, *, relu6, residual=None):
    # 1x1 conv == per-pixel channel matmul; x is NHWC (padded channels).
    N, H, W, Cin = x.shape
    Cout = w.shape[1]
    r = None if residual is None else residual.reshape(N * H * W, Cout)
    y = matmul_bn_act(x.reshape(N * H * W, Cin), w, scale, bias,
                      relu6=relu6, residual=r)
    return y.reshape(N, H, W, Cout)


def depthwise_conv_bn_relu6(x, w9, scale, bias, stride):
    N, H, W, C = x.shape
    s2 = scale.reshape(1, C)
    b2 = bias.reshape(1, C)
    xp = jnp.pad(x, ((0, 0), (1, 1), (1, 1), (0, 0)))     # zero pad = conv pad 1

    if stride == 1:
        TC = min(C, LANE)
        return pl.pallas_call(
            _dw_s1_kernel,
            out_shape=jax.ShapeDtypeStruct((N, H, W, C), jnp.bfloat16),
            grid=(N, C // TC),
            in_specs=[
                pl.BlockSpec((1, H + 2, W + 2, TC), lambda n, c: (n, 0, 0, c)),
                pl.BlockSpec((9, TC), lambda n, c: (0, c)),
                pl.BlockSpec((1, TC), lambda n, c: (0, c)),
                pl.BlockSpec((1, TC), lambda n, c: (0, c)),
            ],
            out_specs=pl.BlockSpec((1, H, W, TC), lambda n, c: (n, 0, 0, c)),
            compiler_params=pltpu.CompilerParams(
                dimension_semantics=("parallel", "parallel"),
                vmem_limit_bytes=VMEM_LIMIT_BYTES),
        )(xp, w9, s2, b2)

    # stride == 2: polyphase reshape (bit-compatible, effectively free) so the
    # kernel only touches the outputs it actually produces.
    assert H % 2 == 0 and W % 2 == 0, "stride-2 blocks expect even spatial dims"
    Ho, Wo = H // 2, W // 2
    Hp, Wp = (H + 2) // 2, (W + 2) // 2
    x5 = xp.reshape(N, Hp, 2, Wp, 2 * C)
    return pl.pallas_call(
        _dw_s2_kernel,
        out_shape=jax.ShapeDtypeStruct((N, Ho, Wo, C), jnp.bfloat16),
        grid=(N,),
        in_specs=[
            pl.BlockSpec((1, Hp, 2, Wp, 2 * C), lambda n: (n, 0, 0, 0, 0)),
            pl.BlockSpec((9, C), lambda n: (0, 0)),
            pl.BlockSpec((1, C), lambda n: (0, 0)),
            pl.BlockSpec((1, C), lambda n: (0, 0)),
        ],
        out_specs=pl.BlockSpec((1, Ho, Wo, C), lambda n: (n, 0, 0, 0)),
        compiler_params=pltpu.CompilerParams(
            dimension_semantics=("parallel",),
            vmem_limit_bytes=VMEM_LIMIT_BYTES),
    )(x5, w9, s2, b2)


def stem_conv(x, p):
    # Full 3x3 conv, stride 2, pad 1: im2col (glue) + tiled MXU matmul kernel.
    N, H, W, Cin = x.shape
    Ho, Wo = H // 2, W // 2
    Kp, Coutp = p["w"].shape
    xp = jnp.pad(x, ((0, 0), (1, 1), (1, 1), (0, 0)))
    patches = [xp[:, kh:kh + 2 * Ho:2, kw:kw + 2 * Wo:2, :]
               for kh in range(3) for kw in range(3)]
    xi = jnp.concatenate(patches, axis=-1).reshape(N * Ho * Wo, 9 * Cin)
    xi = jnp.pad(xi, ((0, 0), (0, Kp - 9 * Cin)))          # K: 27 -> 128 (lane pad)
    y = matmul_bn_act(xi, p["w"], p["scale"], p["bias"], relu6=True)
    return y.reshape(N, Ho, Wo, Coutp)


def global_avgpool(x):
    N, H, W, C = x.shape
    x2 = x.reshape(N, H * W, C)
    return pl.pallas_call(
        _avgpool_kernel,
        out_shape=jax.ShapeDtypeStruct((N, C), jnp.bfloat16),
        grid=(1,),
        in_specs=[pl.BlockSpec((N, H * W, C), lambda i: (0, 0, 0))],
        out_specs=pl.BlockSpec((N, C), lambda i: (0, 0)),
        compiler_params=pltpu.CompilerParams(
            vmem_limit_bytes=VMEM_LIMIT_BYTES),
    )(x2)


# ----------------------------- parameters -----------------------------

def _bn_scale(c, cp):
    # eval-mode BN (gamma=1, beta=0, mean=0, var=1) -> scale = 1/sqrt(1+eps);
    # padded channels get scale 0 so they stay exactly zero through the net.
    return jnp.zeros((cp,), jnp.float32).at[:c].set(1.0 / math.sqrt(1.0 + BN_EPS))


def _conv_weight(key, kh, kw, cin, cout):
    # kaiming_normal_(mode='fan_out'): std = sqrt(2 / (cout * kh * kw))
    std = math.sqrt(2.0 / (cout * kh * kw))
    return std * jax.random.normal(key, (kh, kw, cin, cout), jnp.float32)


def init_mobilenet_v2(key, num_classes=1000, alpha=1.0, round_nearest=8):
    settings = [[1, 16, 1, 1], [6, 24, 2, 2], [6, 32, 3, 2], [6, 64, 4, 2],
                [6, 96, 3, 1], [6, 160, 3, 2], [6, 320, 1, 1]]
    input_channel = _make_divisible(32 * alpha, round_nearest)
    last_channel = _make_divisible(1280 * alpha, round_nearest)
    keys = iter(jax.random.split(key, 256))

    params = {"num_classes": num_classes}

    c0p = _cpad(input_channel)
    w = _conv_weight(next(keys), 3, 3, 3, input_channel).reshape(27, input_channel)
    params["stem"] = {
        "w": _pad2(w, (_cpad(27), c0p)).astype(jnp.bfloat16),
        "scale": _bn_scale(input_channel, c0p),
        "bias": jnp.zeros((c0p,), jnp.float32),
    }

    blocks = []
    in_c = input_channel
    for t, c, n, st in settings:
        out_c = _make_divisible(c * alpha, round_nearest)
        for i in range(n):
            stride = st if i == 0 else 1
            hidden = in_c * t
            in_p, hid_p, out_p = _cpad(in_c), _cpad(hidden), _cpad(out_c)
            blk = {"stride": stride,
                   "use_shortcut": stride == 1 and in_c == out_c,
                   "expand": t != 1}
            if t != 1:
                w = _conv_weight(next(keys), 1, 1, in_c, hidden).reshape(in_c, hidden)
                blk["w_exp"] = _pad2(w, (in_p, hid_p)).astype(jnp.bfloat16)
                blk["s_exp"] = _bn_scale(hidden, hid_p)
                blk["b_exp"] = jnp.zeros((hid_p,), jnp.float32)
            # depthwise weight (torch: (hidden,1,3,3)) -> ours (9, hidden_pad)
            std = math.sqrt(2.0 / (hidden * 9))
            wdw = std * jax.random.normal(next(keys), (9, hidden), jnp.float32)
            blk["w_dw"] = _pad2(wdw, (9, hid_p)).astype(jnp.bfloat16)
            blk["s_dw"] = _bn_scale(hidden, hid_p)
            blk["b_dw"] = jnp.zeros((hid_p,), jnp.float32)
            w = _conv_weight(next(keys), 1, 1, hidden, out_c).reshape(hidden, out_c)
            blk["w_proj"] = _pad2(w, (hid_p, out_p)).astype(jnp.bfloat16)
            blk["s_proj"] = _bn_scale(out_c, out_p)
            blk["b_proj"] = jnp.zeros((out_p,), jnp.float32)
            blocks.append(blk)
            in_c = out_c
    params["blocks"] = blocks

    last_p, in_p = _cpad(last_channel), _cpad(in_c)
    w = _conv_weight(next(keys), 1, 1, in_c, last_channel).reshape(in_c, last_channel)
    params["last"] = {"w": _pad2(w, (in_p, last_p)).astype(jnp.bfloat16),
                      "scale": _bn_scale(last_channel, last_p),
                      "bias": jnp.zeros((last_p,), jnp.float32)}

    ncp = _cpad(num_classes)
    wcls = 0.01 * jax.random.normal(next(keys), (last_channel, num_classes), jnp.float32)
    params["classifier"] = {
        "w": _pad2(wcls, (last_p, ncp)).astype(jnp.bfloat16),
        "b": jnp.zeros((ncp,), jnp.float32),
        "scale": jnp.ones((ncp,), jnp.float32),
    }
    return params


# ----------------------------- forward -----------------------------

def mobilenet_v2_forward(params, x_nchw):
    x = jnp.transpose(x_nchw.astype(jnp.float32), (0, 2, 3, 1))  # NCHW -> NHWC

    x = stem_conv(x, params["stem"])

    for blk in params["blocks"]:
        h = x
        if blk["expand"]:
            h = pointwise_conv(h, blk["w_exp"], blk["s_exp"], blk["b_exp"],
                               relu6=True)
        h = depthwise_conv_bn_relu6(h, blk["w_dw"], blk["s_dw"], blk["b_dw"],
                                    blk["stride"])
        res = x if blk["use_shortcut"] else None
        x = pointwise_conv(h, blk["w_proj"], blk["s_proj"], blk["b_proj"],
                           relu6=False, residual=res)

    p = params["last"]
    x = pointwise_conv(x, p["w"], p["scale"], p["bias"], relu6=True)

    x = global_avgpool(x)                       # (N, last_channel_pad) bf16

    # classifier: Dropout(0.2) is identity at inference; Linear via MXU kernel.
    p = params["classifier"]
    logits = matmul_bn_act(x, p["w"], p["scale"], p["b"], relu6=False,
                           out_dtype=jnp.float32)
    return logits[:, :params["num_classes"]]    # drop lane padding once, at the end


if __name__ == "__main__":
    key = jax.random.PRNGKey(0)
    pkey, xkey = jax.random.split(key)
    num_classes = 10
    params = init_mobilenet_v2(pkey, num_classes=num_classes)
    # Small input consistent with the module: NCHW, 3 channels, 32x32 spatial
    # (32 -> 1 after the five stride-2 stages, matching 224 -> 7 in the original).
    x = jax.random.normal(xkey, (2, 3, 32, 32), jnp.float32)
    logits = jax.block_until_ready(mobilenet_v2_forward(params, x))
    assert logits.shape == (2, num_classes)
    assert bool(jnp.all(jnp.isfinite(logits)))
    print("KERNEL_OK")
</pallas_src>

<mosaic_0001>
module attributes {stable_mosaic.version = 11 : i64} {
  func.func @_mm_bn_act_kernel(%arg0: i32, %arg1: memref<512x128xbf16, #tpu.memory_space<vmem>>, %arg2: memref<128x128xbf16, #tpu.memory_space<vmem>>, %arg3: memref<1x128xf32, #tpu.memory_space<vmem>>, %arg4: memref<1x128xf32, #tpu.memory_space<vmem>>, %arg5: memref<512x128xbf16, #tpu.memory_space<vmem>>) attributes {dimension_semantics = [#tpu.dimension_semantics<parallel>], iteration_bounds = array<i64: 1>, scalar_prefetch = 0 : i64, scratch_operands = 0 : i64, tpu.core_type = #tpu.core_type<tc>, window_params = [{transform_indices = @transform_0, window_bounds = array<i64: 512, 128>}, {pipeline_mode = #tpu.pipeline_mode<synchronous>, transform_indices = @transform_1, window_bounds = array<i64: 128, 128>}, {pipeline_mode = #tpu.pipeline_mode<synchronous>, transform_indices = @transform_2, window_bounds = array<i64: 1, 128>}, {pipeline_mode = #tpu.pipeline_mode<synchronous>, transform_indices = @transform_3, window_bounds = array<i64: 1, 128>}, {transform_indices = @transform_4, window_bounds = array<i64: 512, 128>}]} {
    %c0 = arith.constant 0 : index
    %c0_0 = arith.constant 0 : index
    %0 = vector.load %arg1[%c0, %c0_0] : memref<512x128xbf16, #tpu.memory_space<vmem>>, vector<512x128xbf16>
    %c0_1 = arith.constant 0 : index
    %c0_2 = arith.constant 0 : index
    %1 = vector.load %arg2[%c0_1, %c0_2] : memref<128x128xbf16, #tpu.memory_space<vmem>>, vector<128x128xbf16>
    %cst = arith.constant dense<0.000000e+00> : vector<512x128xf32>
    %2 = tpu.matmul %0, %1, %cst {dimension_numbers = #tpu.dot_dimension_numbers<[1], [0], [0], [1], [0, 0, 1, 1], [], []>} : vector<512x128xbf16>, vector<128x128xbf16>, vector<512x128xf32> -> vector<512x128xf32>
    %c0_3 = arith.constant 0 : index
    %c0_4 = arith.constant 0 : index
    %3 = vector.load %arg3[%c0_3, %c0_4] : memref<1x128xf32, #tpu.memory_space<vmem>>, vector<1x128xf32>
    %4 = vector.broadcast %3 : vector<1x128xf32> to vector<512x128xf32>
    %5 = arith.mulf %2, %4 : vector<512x128xf32>
    %c0_5 = arith.constant 0 : index
    %c0_6 = arith.constant 0 : index
    %6 = vector.load %arg4[%c0_5, %c0_6] : memref<1x128xf32, #tpu.memory_space<vmem>>, vector<1x128xf32>
    %7 = vector.broadcast %6 : vector<1x128xf32> to vector<512x128xf32>
    %8 = arith.addf %5, %7 : vector<512x128xf32>
    %cst_7 = arith.constant 0.000000e+00 : f32
    %cst_8 = arith.constant 6.000000e+00 : f32
    %9 = vector.broadcast %cst_7 : f32 to vector<512x128xf32>
    %10 = arith.maximumf %9, %8 : vector<512x128xf32>
    %11 = vector.broadcast %cst_8 : f32 to vector<512x128xf32>
    %12 = arith.minimumf %11, %10 : vector<512x128xf32>
    %13 = arith.truncf %12 : vector<512x128xf32> to vector<512x128xbf16>
    %c0_9 = arith.constant 0 : index
    %c0_10 = arith.constant 0 : index
    %14 = vector.load %arg5[%c0_9, %c0_10] : memref<512x128xbf16, #tpu.memory_space<vmem>>, vector<512x128xbf16>
    tpu.vector_store %arg5[%c0_9, %c0_10], %13 {strides = array<i32>} : memref<512x128xbf16, #tpu.memory_space<vmem>>, vector<512x128xbf16>,
    return
  }
  func.func @transform_0(%arg0: i32) -> (i32, i32) {
    %c0_i32 = arith.constant 0 : i32
    %c0_i32_0 = arith.constant 0 : i32
    return %arg0, %c0_i32 : i32, i32
  }
  func.func @transform_1(%arg0: i32) -> (i32, i32) {
    %c0_i32 = arith.constant 0 : i32
    %c0_i32_0 = arith.constant 0 : i32
    %c0_i32_1 = arith.constant 0 : i32
    return %c0_i32, %c0_i32_0 : i32, i32
  }
  func.func @transform_2(%arg0: i32) -> (i32, i32) {
    %c0_i32 = arith.constant 0 : i32
    %c0_i32_0 = arith.constant 0 : i32
    %c0_i32_1 = arith.constant 0 : i32
    return %c0_i32, %c0_i32_0 : i32, i32
  }
  func.func @transform_3(%arg0: i32) -> (i32, i32) {
    %c0_i32 = arith.constant 0 : i32
    %c0_i32_0 = arith.constant 0 : i32
    %c0_i32_1 = arith.constant 0 : i32
    return %c0_i32, %c0_i32_0 : i32, i32
  }
  func.func @transform_4(%arg0: i32) -> (i32, i32) {
    %c0_i32 = arith.constant 0 : i32
    %c0_i32_0 = arith.constant 0 : i32
    return %arg0, %c0_i32 : i32, i32
  }
}

</mosaic_0001>

<llo_original>
// kernel: tpu_custom_call.1
$region0: #{tpu_custom_call.1}
  #allocation0 [shape = 'u32[]', space=smem, size = 0x4, offset = 0x4, fixed_abs, tag = 'smem constant byte address 0x4 - core index']
  #allocation1 [shape = 'u32[72,128]{1,0:T(1,128)}', space=vmem, size = 0x9000, scoped, tag = 'internal scratch']
  %s0 = inlined_call_operand.hbm [shape: bf16[512,128], index: 0, kind: input, shape index: {}]
  %s1 = inlined_call_operand.hbm [shape: bf16[128,128], index: 1, kind: input, shape index: {}]
  %s2 = inlined_call_operand.vmem [shape: f32[1,128], index: 2, kind: input, shape index: {}]
  %s3 = inlined_call_operand.vmem [shape: f32[1,128], index: 3, kind: input, shape index: {}]
  %s4 = inlined_call_operand.hbm [shape: bf16[512,128], index: 4, kind: output, shape index: {}]
  %s5 = sld [smem:[#allocation0]]
  $region34: #{tpu_custom_call.1} parent=0
    _
  %s7 = ssub.s32 1, %s5
  %s8 = scalar_select 0, %s7, %s5
  $region1: #{tpu_custom_call.1} parent=0
    #allocation2 [shape = 'u8[131072]{0}', space=vmem, size = 0x20000, scoped, tag = 'input window, operand 0, single buffered']
    #allocation3 [shape = 's32[1]{0}', space=sflag, size = 0x4, scoped, tag = 'scoped memory for tpu_custom_call.1']
    #allocation4 [shape = 's32[1]{0}', space=sflag, size = 0x4, scoped, tag = 'scoped memory for tpu_custom_call.1']
    #allocation5 [shape = 'u8[32768]{0}', space=vmem, size = 0x8000, scoped, tag = 'input window, operand 1, single buffered']
    #allocation6 [shape = 's32[1]{0}', space=sflag, size = 0x4, scoped, tag = 'scoped memory for tpu_custom_call.1']
    #allocation7 [shape = 'u8[131072]{0}', space=vmem, size = 0x20000, scoped, tag = 'output window, operand 0, single buffered']
    %9 = vsyncpa [#allocation3], 0
    %10 = vsyncpa [#allocation6], 0
    %11 = vsyncpa [#allocation4], 0
    // Predicated region
    $region2: #{tpu_custom_call.1} parent=1 // pred_check
      _
    $region3: #{tpu_custom_call.1} parent=1 // pred_check_branch
      %13 = sbr.rel (0) target = $region5
    $region4: #{tpu_custom_call.1} parent=1 // pred_region
      %15 = vsyncadd [#allocation3], 0
      %s16 = sshll.u32 %s0, 4
      %s17 = int_to_ptr.hbm [resolvable:$true] %s16
      %s18 = sshll.u32 [#allocation2], 4
      %s19 = int_to_ptr.vmem [resolvable:$true] %s18
      %24 = dma.hbm_to_vmem [thread:$0]  %s17, 4096, %s19, [#allocation3], 64, 64, 4
    $region5: #{tpu_custom_call.1} parent=1 // pred_fallthru
      _
    // Predicated region
    $region6: #{tpu_custom_call.1} parent=1 // pred_check
      _
    $region7: #{tpu_custom_call.1} parent=1 // pred_check_branch
      %26 = sbr.rel (0) target = $region9
    $region8: #{tpu_custom_call.1} parent=1 // pred_region
      %28 = vsyncadd [#allocation6], 0
      %s29 = sshll.u32 %s1, 4
      %s30 = int_to_ptr.hbm [resolvable:$true] %s29
      %s31 = sshll.u32 [#allocation5], 4
      %s32 = int_to_ptr.vmem [resolvable:$true] %s31
      %37 = dma.hbm_to_vmem [thread:$0]  %s30, 1024, %s32, [#allocation6], 64, 64, 4
    $region9: #{tpu_custom_call.1} parent=1 // pred_fallthru
      _
    // Predicated region
    $region10: #{tpu_custom_call.1} parent=1 // pred_check
      _
    $region11: #{tpu_custom_call.1} parent=1 // pred_check_branch
      %39 = sbr.rel (0) target = $region13
    $region12: #{tpu_custom_call.1} parent=1 // pred_region
      _
    $region13: #{tpu_custom_call.1} parent=1 // pred_fallthru
      _
    // Predicated region
    $region14: #{tpu_custom_call.1} parent=1 // pred_check
      _
    $region15: #{tpu_custom_call.1} parent=1 // pred_check_branch
      %41 = sbr.rel (0) target = $region17
    $region16: #{tpu_custom_call.1} parent=1 // pred_region
      _
    $region17: #{tpu_custom_call.1} parent=1 // pred_fallthru
      _
    // Predicated region
    $region18: #{tpu_custom_call.1} parent=1 // pred_check
      _
    $region19: #{tpu_custom_call.1} parent=1 // pred_check_branch
      %43 = sbr.rel (0) target = $region21
    $region20: #{tpu_custom_call.1} parent=1 // pred_region
      %45 = dma.done [#allocation3], 4096
    $region21: #{tpu_custom_call.1} parent=1 // pred_fallthru
      _
    // Predicated region
    $region22: #{tpu_custom_call.1} parent=1 // pred_check
      _
    $region23: #{tpu_custom_call.1} parent=1 // pred_check_branch
      %47 = sbr.rel (0) target = $region25
    $region24: #{tpu_custom_call.1} parent=1 // pred_region
      %49 = dma.done [#allocation6], 1024
    $region25: #{tpu_custom_call.1} parent=1 // pred_fallthru
      _
    %v50 = vld [vmem:[#allocation2] sm:$0xf]
    %v51 = vld [vmem:[#allocation2 + $0x4] sm:$0xf]
    %v52 = vld [vmem:[#allocation2 + $0x8] sm:$0xf]
    %v53 = vld [vmem:[#allocation2 + $0xc] sm:$0xf]
    %v54 = vld [vmem:[#allocation2 + $0x10] sm:$0xf]
    %v55 = vld [vmem:[#allocation2 + $0x14] sm:$0xf]
    %v56 = vld [vmem:[#allocation2 + $0x18] sm:$0xf]
    %v57 = vld [vmem:[#allocation2 + $0x1c] sm:$0xf]
    %v58 = vld [vmem:[#allocation2 + $0x20] sm:$0xf]
    %v59 = vld [vmem:[#allocation2 + $0x24] sm:$0xf]
    %v60 = vld [vmem:[#allocation2 + $0x28] sm:$0xf]
    %v61 = vld [vmem:[#allocation2 + $0x2c] sm:$0xf]
    %v62 = vld [vmem:[#allocation2 + $0x30] sm:$0xf]
    %v63 = vld [vmem:[#allocation2 + $0x34] sm:$0xf]
    %v64 = vld [vmem:[#allocation2 + $0x38] sm:$0xf]
    %v65 = vld [vmem:[#allocation2 + $0x3c] sm:$0xf]
    %v66 = vld [vmem:[#allocation2 + $0x40] sm:$0xf]
    %v67 = vld [vmem:[#allocation2 + $0x44] sm:$0xf]
    %v68 = vld [vmem:[#allocation2 + $0x48] sm:$0xf]
    %v69 = vld [vmem:[#allocation2 + $0x4c] sm:$0xf]
    %v70 = vld [vmem:[#allocation2 + $0x50] sm:$0xf]
    %v71 = vld [vmem:[#allocation2 + $0x54] sm:$0xf]
    %v72 = vld [vmem:[#allocation2 + $0x58] sm:$0xf]
    %v73 = vld [vmem:[#allocation2 + $0x5c] sm:$0xf]
    %v74 = vld [vmem:[#allocation2 + $0x60] sm:$0xf]
    %v75 = vld [vmem:[#allocation2 + $0x64] sm:$0xf]
    %v76 = vld [vmem:[#allocation2 + $0x68] sm:$0xf]
    %v77 = vld [vmem:[#allocation2 + $0x6c] sm:$0xf]
    %v78 = vld [vmem:[#allocation2 + $0x70] sm:$0xf]
    %v79 = vld [vmem:[#allocation2 + $0x74] sm:$0xf]
    %v80 = vld [vmem:[#allocation2 + $0x78] sm:$0xf]
    %v81 = vld [vmem:[#allocation2 + $0x7c] sm:$0xf]
    %v82 = vld [vmem:[#allocation2 + $0x80] sm:$0xf]
    %v83 = vld [vmem:[#allocation2 + $0x84] sm:$0xf]
    %v84 = vld [vmem:[#allocation2 + $0x88] sm:$0xf]
    %v85 = vld [vmem:[#allocation2 + $0x8c] sm:$0xf]
    %v86 = vld [vmem:[#allocation2 + $0x90] sm:$0xf]
    %v87 = vld [vmem:[#allocation2 + $0x94] sm:$0xf]
    %v88 = vld [vmem:[#allocation2 + $0x98] sm:$0xf]
    %v89 = vld [vmem:[#allocation2 + $0x9c] sm:$0xf]
    %v90 = vld [vmem:[#allocation2 + $0xa0] sm:$0xf]
    %v91 = vld [vmem:[#allocation2 + $0xa4] sm:$0xf]
    %v92 = vld [vmem:[#allocation2 + $0xa8] sm:$0xf]
    %v93 = vld [vmem:[#allocation2 + $0xac] sm:$0xf]
    %v94 = vld [vmem:[#allocation2 + $0xb0] sm:$0xf]
    %v95 = vld [vmem:[#allocation2 + $0xb4] sm:$0xf]
    %v96 = vld [vmem:[#allocation2 + $0xb8] sm:$0xf]
    %v97 = vld [vmem:[#allocation2 + $0xbc] sm:$0xf]
    %v98 = vld [vmem:[#allocation2 + $0xc0] sm:$0xf]
    %v99 = vld [vmem:[#allocation2 + $0xc4] sm:$0xf]
    %v100 = vld [vmem:[#allocation2 + $0xc8] sm:$0xf]
    %v101 = vld [vmem:[#allocation2 + $0xcc] sm:$0xf]
    %v102 = vld [vmem:[#allocation2 + $0xd0] sm:$0xf]
    %v103 = vld [vmem:[#allocation2 + $0xd4] sm:$0xf]
    %v104 = vld [vmem:[#allocation2 + $0xd8] sm:$0xf]
    %v105 = vld [vmem:[#allocation2 + $0xdc] sm:$0xf]
    %v106 = vld [vmem:[#allocation2 + $0xe0] sm:$0xf]
    %v107 = vld [vmem:[#allocation2 + $0xe4] sm:$0xf]
    %v108 = vld [vmem:[#allocation2 + $0xe8] sm:$0xf]
    %v109 = vld [vmem:[#allocation2 + $0xec] sm:$0xf]
    %v110 = vld [vmem:[#allocation2 + $0xf0] sm:$0xf]
    %v111 = vld [vmem:[#allocation2 + $0xf4] sm:$0xf]
    %v112 = vld [vmem:[#allocation2 + $0xf8] sm:$0xf]
    %v113 = vld [vmem:[#allocation2 + $0xfc] sm:$0xf]
    %v114 = vld [vmem:[#allocation5] sm:$0xf]
    %v115 = vld [vmem:[#allocation5 + $0x4] sm:$0xf]
    %v116 = vld [vmem:[#allocation5 + $0x8] sm:$0xf]
    %v117 = vld [vmem:[#allocation5 + $0xc] sm:$0xf]
    %v118 = vld [vmem:[#allocation5 + $0x10] sm:$0xf]
    %v119 = vld [vmem:[#allocation5 + $0x14] sm:$0xf]
    %v120 = vld [vmem:[#allocation5 + $0x18] sm:$0xf]
    %v121 = vld [vmem:[#allocation5 + $0x1c] sm:$0xf]
    %v122 = vld [vmem:[#allocation5 + $0x20] sm:$0xf]
    %v123 = vld [vmem:[#allocation5 + $0x24] sm:$0xf]
    %v124 = vld [vmem:[#allocation5 + $0x28] sm:$0xf]
    %v125 = vld [vmem:[#allocation5 + $0x2c] sm:$0xf]
    %v126 = vld [vmem:[#allocation5 + $0x30] sm:$0xf]
    %v127 = vld [vmem:[#allocation5 + $0x34] sm:$0xf]
    %v128 = vld [vmem:[#allocation5 + $0x38] sm:$0xf]
    %v129 = vld [vmem:[#allocation5 + $0x3c] sm:$0xf]
    %v194 = vunpack.c.l.b16 %v50
    %v195 = vunpack.c.l.b16 %v51
    %v196 = vunpack.c.l.b16 %v52
    %v197 = vunpack.c.l.b16 %v53
    %v198 = vunpack.c.l.b16 %v54
    %v199 = vunpack.c.l.b16 %v55
    %v200 = vunpack.c.l.b16 %v56
    %v201 = vunpack.c.l.b16 %v57
    %v202 = vunpack.c.l.b16 %v58
    %v203 = vunpack.c.l.b16 %v59
    %v204 = vunpack.c.l.b16 %v60
    %v205 = vunpack.c.l.b16 %v61
    %v206 = vunpack.c.l.b16 %v62
    %v207 = vunpack.c.l.b16 %v63
    %v208 = vunpack.c.l.b16 %v64
    %v209 = vunpack.c.l.b16 %v65
    %v210 = vunpack.c.l.b16 %v66
    %v211 = vunpack.c.l.b16 %v67
    %v212 = vunpack.c.l.b16 %v68
    %v213 = vunpack.c.l.b16 %v69
    %v214 = vunpack.c.l.b16 %v70
    %v215 = vunpack.c.l.b16 %v71
    %v216 = vunpack.c.l.b16 %v72
    %v217 = vunpack.c.l.b16 %v73
    %v218 = vunpack.c.l.b16 %v74
    %v219 = vunpack.c.l.b16 %v75
    %v220 = vunpack.c.l.b16 %v76
    %v221 = vunpack.c.l.b16 %v77
    %v222 = vunpack.c.l.b16 %v78
    %v223 = vunpack.c.l.b16 %v79
    %v224 = vunpack.c.l.b16 %v80
    %v225 = vunpack.c.l.b16 %v81
    %v226 = vunpack.c.l.b16 %v82
    %v227 = vunpack.c.l.b16 %v83
    %v228 = vunpack.c.l.b16 %v84
    %v229 = vunpack.c.l.b16 %v85
    %v230 = vunpack.c.l.b16 %v86
    %v231 = vunpack.c.l.b16 %v87
    %v232 = vunpack.c.l.b16 %v88
    %v233 = vunpack.c.l.b16 %v89
    %v234 = vunpack.c.l.b16 %v90
    %v235 = vunpack.c.l.b16 %v91
    %v236 = vunpack.c.l.b16 %v92
    %v237 = vunpack.c.l.b16 %v93
    %v238 = vunpack.c.l.b16 %v94
    %v239 = vunpack.c.l.b16 %v95
    %v240 = vunpack.c.l.b16 %v96
    %v241 = vunpack.c.l.b16 %v97
    %v242 = vunpack.c.l.b16 %v98
    %v243 = vunpack.c.l.b16 %v99
    %v244 = vunpack.c.l.b16 %v100
    %v245 = vunpack.c.l.b16 %v101
    %v246 = vunpack.c.l.b16 %v102
    %v247 = vunpack.c.l.b16 %v103
    %v248 = vunpack.c.l.b16 %v104
    %v249 = vunpack.c.l.b16 %v105
    %v250 = vunpack.c.l.b16 %v106
    %v251 = vunpack.c.l.b16 %v107
    %v252 = vunpack.c.l.b16 %v108
    %v253 = vunpack.c.l.b16 %v109
    %v254 = vunpack.c.l.b16 %v110
    %v255 = vunpack.c.l.b16 %v111
    %v256 = vunpack.c.l.b16 %v112
    %v257 = vunpack.c.l.b16 %v113
    %v258 = vpack.c.b16 %v195, %v194
    %v259 = vpack.c.b16 %v197, %v196
    %v260 = vpack.c.b16 %v199, %v198
    %v261 = vpack.c.b16 %v201, %v200
    %v262 = vpack.c.b16 %v203, %v202
    %v263 = vpack.c.b16 %v205, %v204
    %v264 = vpack.c.b16 %v207, %v206
    %v265 = vpack.c.b16 %v209, %v208
    %v266 = vpack.c.b16 %v211, %v210
    %v267 = vpack.c.b16 %v213, %v212
    %v268 = vpack.c.b16 %v215, %v214
    %v269 = vpack.c.b16 %v217, %v216
    %v270 = vpack.c.b16 %v219, %v218
    %v271 = vpack.c.b16 %v221, %v220
    %v272 = vpack.c.b16 %v223, %v222
    %v273 = vpack.c.b16 %v225, %v224
    %v274 = vpack.c.b16 %v227, %v226
    %v275 = vpack.c.b16 %v229, %v228
    %v276 = vpack.c.b16 %v231, %v230
    %v277 = vpack.c.b16 %v233, %v232
    %v278 = vpack.c.b16 %v235, %v234
    %v279 = vpack.c.b16 %v237, %v236
    %v280 = vpack.c.b16 %v239, %v238
    %v281 = vpack.c.b16 %v241, %v240
    %v282 = vpack.c.b16 %v243, %v242
    %v283 = vpack.c.b16 %v245, %v244
    %v284 = vpack.c.b16 %v247, %v246
    %v285 = vpack.c.b16 %v249, %v248
    %v286 = vpack.c.b16 %v251, %v250
    %v287 = vpack.c.b16 %v253, %v252
    %v288 = vpack.c.b16 %v255, %v254
    %v289 = vpack.c.b16 %v257, %v256
    %v338 = vunpack.c.l.b16 %v114
    %v339 = vunpack.c.l.b16 %v115
    %v340 = vunpack.c.l.b16 %v116
    %v341 = vunpack.c.l.b16 %v117
    %v342 = vunpack.c.l.b16 %v118
    %v343 = vunpack.c.l.b16 %v119
    %v344 = vunpack.c.l.b16 %v120
    %v345 = vunpack.c.l.b16 %v121
    %v346 = vunpack.c.l.b16 %v122
    %v347 = vunpack.c.l.b16 %v123
    %v348 = vunpack.c.l.b16 %v124
    %v349 = vunpack.c.l.b16 %v125
    %v350 = vunpack.c.l.b16 %v126
    %v351 = vunpack.c.l.b16 %v127
    %v352 = vunpack.c.l.b16 %v128
    %v353 = vunpack.c.l.b16 %v129
    %v354 = vpack.c.b16 %v339, %v338
    %v355 = vpack.c.b16 %v341, %v340
    %v356 = vpack.c.b16 %v343, %v342
    %v357 = vpack.c.b16 %v345, %v344
    %v358 = vpack.c.b16 %v347, %v346
    %v359 = vpack.c.b16 %v349, %v348
    %v360 = vpack.c.b16 %v351, %v350
    %v361 = vpack.c.b16 %v353, %v352
    %370 = vmatpush.bf16.msra.mxu0 %v361
    %371 = vmatpush.bf16.msra.mxu0 %v360
    %372 = vmatpush.bf16.msra.mxu0 %v359
    %373 = vmatpush.bf16.msra.mxu0 %v358
    %374 = vmatpush.bf16.msra.mxu0 %v357
    %375 = vmatpush.bf16.msra.mxu0 %v356
    %376 = vmatpush.bf16.msra.mxu0 %v355
    %377 = vmatpush.bf16.msra.mxu0 %v354
    %378 = vmatmul.bf16.gmra.mxu0 %v258
    %v379 = vpop.f32.mrf.mxu0
    %v380 = vadd.f32 0.0, %v379
    %v381 = vpop.f32.mrf.mxu0
    %v382 = vadd.f32 0.0, %v381
    %383 = vmatmul.bf16.gmra.mxu0 %v259
    %v384 = vpop.f32.mrf.mxu0
    %v385 = vadd.f32 0.0, %v384
    %v386 = vpop.f32.mrf.mxu0
    %v387 = vadd.f32 0.0, %v386
    %388 = vmatmul.bf16.gmra.mxu0 %v260
    %v389 = vpop.f32.mrf.mxu0
    %v390 = vadd.f32 0.0, %v389
    %v391 = vpop.f32.mrf.mxu0
    %v392 = vadd.f32 0.0, %v391
    %393 = vmatmul.bf16.gmra.mxu0 %v261
    %v394 = vpop.f32.mrf.mxu0
    %v395 = vadd.f32 0.0, %v394
    %v396 = vpop.f32.mrf.mxu0
    %v397 = vadd.f32 0.0, %v396
    %398 = vmatmul.bf16.gmra.mxu0 %v262
    %v399 = vpop.f32.mrf.mxu0
    %v400 = vadd.f32 0.0, %v399
    %v401 = vpop.f32.mrf.mxu0
    %v402 = vadd.f32 0.0, %v401
    %403 = vmatmul.bf16.gmra.mxu0 %v263
    %v404 = vpop.f32.mrf.mxu0
    %v405 = vadd.f32 0.0, %v404
    %v406 = vpop.f32.mrf.mxu0
    %v407 = vadd.f32 0.0, %v406
    %408 = vmatmul.bf16.gmra.mxu0 %v264
    %v409 = vpop.f32.mrf.mxu0
    %v410 = vadd.f32 0.0, %v409
    %v411 = vpop.f32.mrf.mxu0
    %v412 = vadd.f32 0.0, %v411
    %413 = vmatmul.bf16.gmra.mxu0 %v265
    %v414 = vpop.f32.mrf.mxu0
    %v415 = vadd.f32 0.0, %v414
    %v416 = vpop.f32.mrf.mxu0
    %v417 = vadd.f32 0.0, %v416
    %418 = vmatmul.bf16.gmra.mxu0 %v266
    %v419 = vpop.f32.mrf.mxu0
    %v420 = vadd.f32 0.0, %v419
    %v421 = vpop.f32.mrf.mxu0
    %v422 = vadd.f32 0.0, %v421
    %423 = vmatmul.bf16.gmra.mxu0 %v267
    %v424 = vpop.f32.mrf.mxu0
    %v425 = vadd.f32 0.0, %v424
    %v426 = vpop.f32.mrf.mxu0
    %v427 = vadd.f32 0.0, %v426
    %428 = vmatmul.bf16.gmra.mxu0 %v268
    %v429 = vpop.f32.mrf.mxu0
    %v430 = vadd.f32 0.0, %v429
    %v431 = vpop.f32.mrf.mxu0
    %v432 = vadd.f32 0.0, %v431
    %433 = vmatmul.bf16.gmra.mxu0 %v269
    %v434 = vpop.f32.mrf.mxu0
    %v435 = vadd.f32 0.0, %v434
    %v436 = vpop.f32.mrf.mxu0
    %v437 = vadd.f32 0.0, %v436
    %438 = vmatmul.bf16.gmra.mxu0 %v270
    %v439 = vpop.f32.mrf.mxu0
    %v440 = vadd.f32 0.0, %v439
    %v441 = vpop.f32.mrf.mxu0
    %v442 = vadd.f32 0.0, %v441
    %443 = vmatmul.bf16.gmra.mxu0 %v271
    %v444 = vpop.f32.mrf.mxu0
    %v445 = vadd.f32 0.0, %v444
    %v446 = vpop.f32.mrf.mxu0
    %v447 = vadd.f32 0.0, %v446
    %448 = vmatmul.bf16.gmra.mxu0 %v272
    %v449 = vpop.f32.mrf.mxu0
    %v450 = vadd.f32 0.0, %v449
    %v451 = vpop.f32.mrf.mxu0
    %v452 = vadd.f32 0.0, %v451
    %453 = vmatmul.bf16.gmra.mxu0 %v273
    %v454 = vpop.f32.mrf.mxu0
    %v455 = vadd.f32 0.0, %v454
    %v456 = vpop.f32.mrf.mxu0
    %v457 = vadd.f32 0.0, %v456
    %458 = vmatmul.bf16.gmra.mxu0 %v274
    %v459 = vpop.f32.mrf.mxu0
    %v460 = vadd.f32 0.0, %v459
    %v461 = vpop.f32.mrf.mxu0
    %v462 = vadd.f32 0.0, %v461
    %463 = vmatmul.bf16.gmra.mxu0 %v275
    %v464 = vpop.f32.mrf.mxu0
    %v465 = vadd.f32 0.0, %v464
    %v466 = vpop.f32.mrf.mxu0
    %v467 = vadd.f32 0.0, %v466
    %468 = vmatmul.bf16.gmra.mxu0 %v276
    %v469 = vpop.f32.mrf.mxu0
    %v470 = vadd.f32 0.0, %v469
    %v471 = vpop.f32.mrf.mxu0
    %v472 = vadd.f32 0.0, %v471
    %473 = vmatmul.bf16.gmra.mxu0 %v277
    %v474 = vpop.f32.mrf.mxu0
    %v475 = vadd.f32 0.0, %v474
    %v476 = vpop.f32.mrf.mxu0
    %v477 = vadd.f32 0.0, %v476
    %478 = vmatmul.bf16.gmra.mxu0 %v278
    %v479 = vpop.f32.mrf.mxu0
    %v480 = vadd.f32 0.0, %v479
    %v481 = vpop.f32.mrf.mxu0
    %v482 = vadd.f32 0.0, %v481
    %483 = vmatmul.bf16.gmra.mxu0 %v279
    %v484 = vpop.f32.mrf.mxu0
    %v485 = vadd.f32 0.0, %v484
    %v486 = vpop.f32.mrf.mxu0
    %v487 = vadd.f32 0.0, %v486
    %488 = vmatmul.bf16.gmra.mxu0 %v280
    %v489 = vpop.f32.mrf.mxu0
    %v490 = vadd.f32 0.0, %v489
    %v491 = vpop.f32.mrf.mxu0
    %v492 = vadd.f32 0.0, %v491
    %493 = vmatmul.bf16.gmra.mxu0 %v281
    %v494 = vpop.f32.mrf.mxu0
    %v495 = vadd.f32 0.0, %v494
    %v496 = vpop.f32.mrf.mxu0
    %v497 = vadd.f32 0.0, %v496
    %498 = vmatmul.bf16.gmra.mxu0 %v282
    %v499 = vpop.f32.mrf.mxu0
    %v500 = vadd.f32 0.0, %v499
    %v501 = vpop.f32.mrf.mxu0
    %v502 = vadd.f32 0.0, %v501
    %503 = vmatmul.bf16.gmra.mxu0 %v283
    %v504 = vpop.f32.mrf.mxu0
    %v505 = vadd.f32 0.0, %v504
    %v506 = vpop.f32.mrf.mxu0
    %v507 = vadd.f32 0.0, %v506
    %508 = vmatmul.bf16.gmra.mxu0 %v284
    %v509 = vpop.f32.mrf.mxu0
    %v510 = vadd.f32 0.0, %v509
    %v511 = vpop.f32.mrf.mxu0
    %v512 = vadd.f32 0.0, %v511
    %513 = vmatmul.bf16.gmra.mxu0 %v285
    %v514 = vpop.f32.mrf.mxu0
    %v515 = vadd.f32 0.0, %v514
    %v516 = vpop.f32.mrf.mxu0
    %v517 = vadd.f32 0.0, %v516
    %518 = vmatmul.bf16.gmra.mxu0 %v286
    %v519 = vpop.f32.mrf.mxu0
    %v520 = vadd.f32 0.0, %v519
    %v521 = vpop.f32.mrf.mxu0
    %v522 = vadd.f32 0.0, %v521
    %523 = vmatmul.bf16.gmra.mxu0 %v287
    %v524 = vpop.f32.mrf.mxu0
    %v525 = vadd.f32 0.0, %v524
    %v526 = vpop.f32.mrf.mxu0
    %v527 = vadd.f32 0.0, %v526
    %528 = vmatmul.bf16.gmra.mxu0 %v288
    %v529 = vpop.f32.mrf.mxu0
    %v530 = vadd.f32 0.0, %v529
    %v531 = vpop.f32.mrf.mxu0
    %v532 = vadd.f32 0.0, %v531
    %533 = vmatmul.bf16.gmra.mxu0 %v289
    %v534 = vpop.f32.mrf.mxu0
    %v535 = vadd.f32 0.0, %v534
    %v536 = vpop.f32.mrf.mxu0
    %v537 = vadd.f32 0.0, %v536
    %538 = vdwg.mxu0
    %v539 = vld [vmem:[%s2] sm:$0x1]
    %v541 = vperm.slane %v539, 0
    %v543 = vmul.f32 %v380, %v541
    %v544 = vmul.f32 %v382, %v541
    %v545 = vmul.f32 %v385, %v541
    %v546 = vmul.f32 %v387, %v541
    %v547 = vmul.f32 %v390, %v541
    %v548 = vmul.f32 %v392, %v541
    %v549 = vmul.f32 %v395, %v541
    %v550 = vmul.f32 %v397, %v541
    %v551 = vmul.f32 %v400, %v541
    %v552 = vmul.f32 %v402, %v541
    %v553 = vmul.f32 %v405, %v541
    %v554 = vmul.f32 %v407, %v541
    %v555 = vmul.f32 %v410, %v541
    %v556 = vmul.f32 %v412, %v541
    %v557 = vmul.f32 %v415, %v541
    %v558 = vmul.f32 %v417, %v541
    %v559 = vmul.f32 %v420, %v541
    %v560 = vmul.f32 %v422, %v541
    %v561 = vmul.f32 %v425, %v541
    %v562 = vmul.f32 %v427, %v541
    %v563 = vmul.f32 %v430, %v541
    %v564 = vmul.f32 %v432, %v541
    %v565 = vmul.f32 %v435, %v541
    %v566 = vmul.f32 %v437, %v541
    %v567 = vmul.f32 %v440, %v541
    %v568 = vmul.f32 %v442, %v541
    %v569 = vmul.f32 %v445, %v541
    %v570 = vmul.f32 %v447, %v541
    %v571 = vmul.f32 %v450, %v541
    %v572 = vmul.f32 %v452, %v541
    %v573 = vmul.f32 %v455, %v541
    %v574 = vmul.f32 %v457, %v541
    %v575 = vmul.f32 %v460, %v541
    %v576 = vmul.f32 %v462, %v541
    %v577 = vmul.f32 %v465, %v541
    %v578 = vmul.f32 %v467, %v541
    %v579 = vmul.f32 %v470, %v541
    %v580 = vmul.f32 %v472, %v541
    %v581 = vmul.f32 %v475, %v541
    %v582 = vmul.f32 %v477, %v541
    %v583 = vmul.f32 %v480, %v541
    %v584 = vmul.f32 %v482, %v541
    %v585 = vmul.f32 %v485, %v541
    %v586 = vmul.f32 %v487, %v541
    %v587 = vmul.f32 %v490, %v541
    %v588 = vmul.f32 %v492, %v541
    %v589 = vmul.f32 %v495, %v541
    %v590 = vmul.f32 %v497, %v541
    %v591 = vmul.f32 %v500, %v541
    %v592 = vmul.f32 %v502, %v541
    %v593 = vmul.f32 %v505, %v541
    %v594 = vmul.f32 %v507, %v541
    %v595 = vmul.f32 %v510, %v541
    %v596 = vmul.f32 %v512, %v541
    %v597 = vmul.f32 %v515, %v541
    %v598 = vmul.f32 %v517, %v541
    %v599 = vmul.f32 %v520, %v541
    %v600 = vmul.f32 %v522, %v541
    %v601 = vmul.f32 %v525, %v541
    %v602 = vmul.f32 %v527, %v541
    %v603 = vmul.f32 %v530, %v541
    %v604 = vmul.f32 %v532, %v541
    %v605 = vmul.f32 %v535, %v541
    %v606 = vmul.f32 %v537, %v541
    %v607 = vld [vmem:[%s3] sm:$0x1]
    %v609 = vperm.slane %v607, 0
    %v611 = vadd.f32 %v543, %v609
    %v612 = vadd.f32 %v544, %v609
    %v613 = vadd.f32 %v545, %v609
    %v614 = vadd.f32 %v546, %v609
    %v615 = vadd.f32 %v547, %v609
    %v616 = vadd.f32 %v548, %v609
    %v617 = vadd.f32 %v549, %v609
    %v618 = vadd.f32 %v550, %v609
    %v619 = vadd.f32 %v551, %v609
    %v620 = vadd.f32 %v552, %v609
    %v621 = vadd.f32 %v553, %v609
    %v622 = vadd.f32 %v554, %v609
    %v623 = vadd.f32 %v555, %v609
    %v624 = vadd.f32 %v556, %v609
    %v625 = vadd.f32 %v557, %v609
    %v626 = vadd.f32 %v558, %v609
    %v627 = vadd.f32 %v559, %v609
    %v628 = vadd.f32 %v560, %v609
    %v629 = vadd.f32 %v561, %v609
    %v630 = vadd.f32 %v562, %v609
    %v631 = vadd.f32 %v563, %v609
    %v632 = vadd.f32 %v564, %v609
    %v633 = vadd.f32 %v565, %v609
    %v634 = vadd.f32 %v566, %v609
    %v635 = vadd.f32 %v567, %v609
    %v636 = vadd.f32 %v568, %v609
    %v637 = vadd.f32 %v569, %v609
    %v638 = vadd.f32 %v570, %v609
    %v639 = vadd.f32 %v571, %v609
    %v640 = vadd.f32 %v572, %v609
    %v641 = vadd.f32 %v573, %v609
    %v642 = vadd.f32 %v574, %v609
    %v643 = vadd.f32 %v575, %v609
    %v644 = vadd.f32 %v576, %v609
    %v645 = vadd.f32 %v577, %v609
    %v646 = vadd.f32 %v578, %v609
    %v647 = vadd.f32 %v579, %v609
    %v648 = vadd.f32 %v580, %v609
    %v649 = vadd.f32 %v581, %v609
    %v650 = vadd.f32 %v582, %v609
    %v651 = vadd.f32 %v583, %v609
    %v652 = vadd.f32 %v584, %v609
    %v653 = vadd.f32 %v585, %v609
    %v654 = vadd.f32 %v586, %v609
    %v655 = vadd.f32 %v587, %v609
    %v656 = vadd.f32 %v588, %v609
    %v657 = vadd.f32 %v589, %v609
    %v658 = vadd.f32 %v590, %v609
    %v659 = vadd.f32 %v591, %v609
    %v660 = vadd.f32 %v592, %v609
    %v661 = vadd.f32 %v593, %v609
    %v662 = vadd.f32 %v594, %v609
    %v663 = vadd.f32 %v595, %v609
    %v664 = vadd.f32 %v596, %v609
    %v665 = vadd.f32 %v597, %v609
    %v666 = vadd.f32 %v598, %v609
    %v667 = vadd.f32 %v599, %v609
    %v668 = vadd.f32 %v600, %v609
    %v669 = vadd.f32 %v601, %v609
    %v670 = vadd.f32 %v602, %v609
    %v671 = vadd.f32 %v603, %v609
    %v672 = vadd.f32 %v604, %v609
    %v673 = vadd.f32 %v605, %v609
    %v674 = vadd.f32 %v606, %v609
    %v675 = vmax.f32 %v611, 0.0
    %v676 = vmax.f32 %v612, 0.0
    %v677 = vmax.f32 %v613, 0.0
    %v678 = vmax.f32 %v614, 0.0
    %v679 = vmax.f32 %v615, 0.0
    %v680 = vmax.f32 %v616, 0.0
    %v681 = vmax.f32 %v617, 0.0
    %v682 = vmax.f32 %v618, 0.0
    %v683 = vmax.f32 %v619, 0.0
    %v684 = vmax.f32 %v620, 0.0
    %v685 = vmax.f32 %v621, 0.0
    %v686 = vmax.f32 %v622, 0.0
    %v687 = vmax.f32 %v623, 0.0
    %v688 = vmax.f32 %v624, 0.0
    %v689 = vmax.f32 %v625, 0.0
    %v690 = vmax.f32 %v626, 0.0
    %v691 = vmax.f32 %v627, 0.0
    %v692 = vmax.f32 %v628, 0.0
    %v693 = vmax.f32 %v629, 0.0
    %v694 = vmax.f32 %v630, 0.0
    %v695 = vmax.f32 %v631, 0.0
    %v696 = vmax.f32 %v632, 0.0
    %v697 = vmax.f32 %v633, 0.0
    %v698 = vmax.f32 %v634, 0.0
    %v699 = vmax.f32 %v635, 0.0
    %v700 = vmax.f32 %v636, 0.0
    %v701 = vmax.f32 %v637, 0.0
    %v702 = vmax.f32 %v638, 0.0
    %v703 = vmax.f32 %v639, 0.0
    %v704 = vmax.f32 %v640, 0.0
    %v705 = vmax.f32 %v641, 0.0
    %v706 = vmax.f32 %v642, 0.0
    %v707 = vmax.f32 %v643, 0.0
    %v708 = vmax.f32 %v644, 0.0
    %v709 = vmax.f32 %v645, 0.0
    %v710 = vmax.f32 %v646, 0.0
    %v711 = vmax.f32 %v647, 0.0
    %v712 = vmax.f32 %v648, 0.0
    %v713 = vmax.f32 %v649, 0.0
    %v714 = vmax.f32 %v650, 0.0
    %v715 = vmax.f32 %v651, 0.0
    %v716 = vmax.f32 %v652, 0.0
    %v717 = vmax.f32 %v653, 0.0
    %v718 = vmax.f32 %v654, 0.0
    %v719 = vmax.f32 %v655, 0.0
    %v720 = vmax.f32 %v656, 0.0
    %v721 = vmax.f32 %v657, 0.0
    %v722 = vmax.f32 %v658, 0.0
    %v723 = vmax.f32 %v659, 0.0
    %v724 = vmax.f32 %v660, 0.0
    %v725 = vmax.f32 %v661, 0.0
    %v726 = vmax.f32 %v662, 0.0
    %v727 = vmax.f32 %v663, 0.0
    %v728 = vmax.f32 %v664, 0.0
    %v729 = vmax.f32 %v665, 0.0
    %v730 = vmax.f32 %v666, 0.0
    %v731 = vmax.f32 %v667, 0.0
    %v732 = vmax.f32 %v668, 0.0
    %v733 = vmax.f32 %v669, 0.0
    %v734 = vmax.f32 %v670, 0.0
    %v735 = vmax.f32 %v671, 0.0
    %v736 = vmax.f32 %v672, 0.0
    %v737 = vmax.f32 %v673, 0.0
    %v738 = vmax.f32 %v674, 0.0
    %v739 = vmin.f32 %v675, 6.0
    %v740 = vmin.f32 %v676, 6.0
    %v741 = vmin.f32 %v677, 6.0
    %v742 = vmin.f32 %v678, 6.0
    %v743 = vmin.f32 %v679, 6.0
    %v744 = vmin.f32 %v680, 6.0
    %v745 = vmin.f32 %v681, 6.0
    %v746 = vmin.f32 %v682, 6.0
    %v747 = vmin.f32 %v683, 6.0
    %v748 = vmin.f32 %v684, 6.0
    %v749 = vmin.f32 %v685, 6.0
    %v750 = vmin.f32 %v686, 6.0
    %v751 = vmin.f32 %v687, 6.0
    %v752 = vmin.f32 %v688, 6.0
    %v753 = vmin.f32 %v689, 6.0
    %v754 = vmin.f32 %v690, 6.0
    %v755 = vmin.f32 %v691, 6.0
    %v756 = vmin.f32 %v692, 6.0
    %v757 = vmin.f32 %v693, 6.0
    %v758 = vmin.f32 %v694, 6.0
    %v759 = vmin.f32 %v695, 6.0
    %v760 = vmin.f32 %v696, 6.0
    %v761 = vmin.f32 %v697, 6.0
    %v762 = vmin.f32 %v698, 6.0
    %v763 = vmin.f32 %v699, 6.0
    %v764 = vmin.f32 %v700, 6.0
    %v765 = vmin.f32 %v701, 6.0
    %v766 = vmin.f32 %v702, 6.0
    %v767 = vmin.f32 %v703, 6.0
    %v768 = vmin.f32 %v704, 6.0
    %v769 = vmin.f32 %v705, 6.0
    %v770 = vmin.f32 %v706, 6.0
    %v771 = vmin.f32 %v707, 6.0
    %v772 = vmin.f32 %v708, 6.0
    %v773 = vmin.f32 %v709, 6.0
    %v774 = vmin.f32 %v710, 6.0
    %v775 = vmin.f32 %v711, 6.0
    %v776 = vmin.f32 %v712, 6.0
    %v777 = vmin.f32 %v713, 6.0
    %v778 = vmin.f32 %v714, 6.0
    %v779 = vmin.f32 %v715, 6.0
    %v780 = vmin.f32 %v716, 6.0
    %v781 = vmin.f32 %v717, 6.0
    %v782 = vmin.f32 %v718, 6.0
    %v783 = vmin.f32 %v719, 6.0
    %v784 = vmin.f32 %v720, 6.0
    %v785 = vmin.f32 %v721, 6.0
    %v786 = vmin.f32 %v722, 6.0
    %v787 = vmin.f32 %v723, 6.0
    %v788 = vmin.f32 %v724, 6.0
    %v789 = vmin.f32 %v725, 6.0
    %v790 = vmin.f32 %v726, 6.0
    %v791 = vmin.f32 %v727, 6.0
    %v792 = vmin.f32 %v728, 6.0
    %v793 = vmin.f32 %v729, 6.0
    %v794 = vmin.f32 %v730, 6.0
    %v795 = vmin.f32 %v731, 6.0
    %v796 = vmin.f32 %v732, 6.0
    %v797 = vmin.f32 %v733, 6.0
    %v798 = vmin.f32 %v734, 6.0
    %v799 = vmin.f32 %v735, 6.0
    %v800 = vmin.f32 %v736, 6.0
    %v801 = vmin.f32 %v737, 6.0
    %v802 = vmin.f32 %v738, 6.0
    %v803 = vpack.c.bf16 %v739, %v739
    %v804 = vpack.c.bf16 %v740, %v740
    %v805 = vpack.c.bf16 %v741, %v741
    %v806 = vpack.c.bf16 %v742, %v742
    %v807 = vpack.c.bf16 %v743, %v743
    %v808 = vpack.c.bf16 %v744, %v744
    %v809 = vpack.c.bf16 %v745, %v745
    %v810 = vpack.c.bf16 %v746, %v746
    %v811 = vpack.c.bf16 %v747, %v747
    %v812 = vpack.c.bf16 %v748, %v748
    %v813 = vpack.c.bf16 %v749, %v749
    %v814 = vpack.c.bf16 %v750, %v750
    %v815 = vpack.c.bf16 %v751, %v751
    %v816 = vpack.c.bf16 %v752, %v752
    %v817 = vpack.c.bf16 %v753, %v753
    %v818 = vpack.c.bf16 %v754, %v754
    %v819 = vpack.c.bf16 %v755, %v755
    %v820 = vpack.c.bf16 %v756, %v756
    %v821 = vpack.c.bf16 %v757, %v757
    %v822 = vpack.c.bf16 %v758, %v758
    %v823 = vpack.c.bf16 %v759, %v759
    %v824 = vpack.c.bf16 %v760, %v760
    %v825 = vpack.c.bf16 %v761, %v761
    %v826 = vpack.c.bf16 %v762, %v762
    %v827 = vpack.c.bf16 %v763, %v763
    %v828 = vpack.c.bf16 %v764, %v764
    %v829 = vpack.c.bf16 %v765, %v765
    %v830 = vpack.c.bf16 %v766, %v766
    %v831 = vpack.c.bf16 %v767, %v767
    %v832 = vpack.c.bf16 %v768, %v768
    %v833 = vpack.c.bf16 %v769, %v769
    %v834 = vpack.c.bf16 %v770, %v770
    %v835 = vpack.c.bf16 %v771, %v771
    %v836 = vpack.c.bf16 %v772, %v772
    %v837 = vpack.c.bf16 %v773, %v773
    %v838 = vpack.c.bf16 %v774, %v774
    %v839 = vpack.c.bf16 %v775, %v775
    %v840 = vpack.c.bf16 %v776, %v776
    %v841 = vpack.c.bf16 %v777, %v777
    %v842 = vpack.c.bf16 %v778, %v778
    %v843 = vpack.c.bf16 %v779, %v779
    %v844 = vpack.c.bf16 %v780, %v780
    %v845 = vpack.c.bf16 %v781, %v781
    %v846 = vpack.c.bf16 %v782, %v782
    %v847 = vpack.c.bf16 %v783, %v783
    %v848 = vpack.c.bf16 %v784, %v784
    %v849 = vpack.c.bf16 %v785, %v785
    %v850 = vpack.c.bf16 %v786, %v786
    %v851 = vpack.c.bf16 %v787, %v787
    %v852 = vpack.c.bf16 %v788, %v788
    %v853 = vpack.c.bf16 %v789, %v789
    %v854 = vpack.c.bf16 %v790, %v790
    %v855 = vpack.c.bf16 %v791, %v791
    %v856 = vpack.c.bf16 %v792, %v792
    %v857 = vpack.c.bf16 %v793, %v793
    %v858 = vpack.c.bf16 %v794, %v794
    %v859 = vpack.c.bf16 %v795, %v795
    %v860 = vpack.c.bf16 %v796, %v796
    %v861 = vpack.c.bf16 %v797, %v797
    %v862 = vpack.c.bf16 %v798, %v798
    %v863 = vpack.c.bf16 %v799, %v799
    %v864 = vpack.c.bf16 %v800, %v800
    %v865 = vpack.c.bf16 %v801, %v801
    %v866 = vpack.c.bf16 %v802, %v802
    %867 = vst [vmem:[#allocation7] sm:$0xf] %v803
    %868 = vst [vmem:[#allocation7 + $0x4] sm:$0xf] %v804
    %869 = vst [vmem:[#allocation7 + $0x8] sm:$0xf] %v805
    %870 = vst [vmem:[#allocation7 + $0xc] sm:$0xf] %v806
    %871 = vst [vmem:[#allocation7 + $0x10] sm:$0xf] %v807
    %872 = vst [vmem:[#allocation7 + $0x14] sm:$0xf] %v808
    %873 = vst [vmem:[#allocation7 + $0x18] sm:$0xf] %v809
    %874 = vst [vmem:[#allocation7 + $0x1c] sm:$0xf] %v810
    %875 = vst [vmem:[#allocation7 + $0x20] sm:$0xf] %v811
    %876 = vst [vmem:[#allocation7 + $0x24] sm:$0xf] %v812
    %877 = vst [vmem:[#allocation7 + $0x28] sm:$0xf] %v813
    %878 = vst [vmem:[#allocation7 + $0x2c] sm:$0xf] %v814
    %879 = vst [vmem:[#allocation7 + $0x30] sm:$0xf] %v815
    %880 = vst [vmem:[#allocation7 + $0x34] sm:$0xf] %v816
    %881 = vst [vmem:[#allocation7 + $0x38] sm:$0xf] %v817
    %882 = vst [vmem:[#allocation7 + $0x3c] sm:$0xf] %v818
    %883 = vst [vmem:[#allocation7 + $0x40] sm:$0xf] %v819
    %884 = vst [vmem:[#allocation7 + $0x44] sm:$0xf] %v820
    %885 = vst [vmem:[#allocation7 + $0x48] sm:$0xf] %v821
    %886 = vst [vmem:[#allocation7 + $0x4c] sm:$0xf] %v822
    %887 = vst [vmem:[#allocation7 + $0x50] sm:$0xf] %v823
    %888 = vst [vmem:[#allocation7 + $0x54] sm:$0xf] %v824
    %889 = vst [vmem:[#allocation7 + $0x58] sm:$0xf] %v825
    %890 = vst [vmem:[#allocation7 + $0x5c] sm:$0xf] %v826
    %891 = vst [vmem:[#allocation7 + $0x60] sm:$0xf] %v827
    %892 = vst [vmem:[#allocation7 + $0x64] sm:$0xf] %v828
    %893 = vst [vmem:[#allocation7 + $0x68] sm:$0xf] %v829
    %894 = vst [vmem:[#allocation7 + $0x6c] sm:$0xf] %v830
    %895 = vst [vmem:[#allocation7 + $0x70] sm:$0xf] %v831
    %896 = vst [vmem:[#allocation7 + $0x74] sm:$0xf] %v832
    %897 = vst [vmem:[#allocation7 + $0x78] sm:$0xf] %v833
    %898 = vst [vmem:[#allocation7 + $0x7c] sm:$0xf] %v834
    %899 = vst [vmem:[#allocation7 + $0x80] sm:$0xf] %v835
    %900 = vst [vmem:[#allocation7 + $0x84] sm:$0xf] %v836
    %901 = vst [vmem:[#allocation7 + $0x88] sm:$0xf] %v837
    %902 = vst [vmem:[#allocation7 + $0x8c] sm:$0xf] %v838
    %903 = vst [vmem:[#allocation7 + $0x90] sm:$0xf] %v839
    %904 = vst [vmem:[#allocation7 + $0x94] sm:$0xf] %v840
    %905 = vst [vmem:[#allocation7 + $0x98] sm:$0xf] %v841
    %906 = vst [vmem:[#allocation7 + $0x9c] sm:$0xf] %v842
    %907 = vst [vmem:[#allocation7 + $0xa0] sm:$0xf] %v843
    %908 = vst [vmem:[#allocation7 + $0xa4] sm:$0xf] %v844
    %909 = vst [vmem:[#allocation7 + $0xa8] sm:$0xf] %v845
    %910 = vst [vmem:[#allocation7 + $0xac] sm:$0xf] %v846
    %911 = vst [vmem:[#allocation7 + $0xb0] sm:$0xf] %v847
    %912 = vst [vmem:[#allocation7 + $0xb4] sm:$0xf] %v848
    %913 = vst [vmem:[#allocation7 + $0xb8] sm:$0xf] %v849
    %914 = vst [vmem:[#allocation7 + $0xbc] sm:$0xf] %v850
    %915 = vst [vmem:[#allocation7 + $0xc0] sm:$0xf] %v851
    %916 = vst [vmem:[#allocation7 + $0xc4] sm:$0xf] %v852
    %917 = vst [vmem:[#allocation7 + $0xc8] sm:$0xf] %v853
    %918 = vst [vmem:[#allocation7 + $0xcc] sm:$0xf] %v854
    %919 = vst [vmem:[#allocation7 + $0xd0] sm:$0xf] %v855
    %920 = vst [vmem:[#allocation7 + $0xd4] sm:$0xf] %v856
    %921 = vst [vmem:[#allocation7 + $0xd8] sm:$0xf] %v857
    %922 = vst [vmem:[#allocation7 + $0xdc] sm:$0xf] %v858
    %923 = vst [vmem:[#allocation7 + $0xe0] sm:$0xf] %v859
    %924 = vst [vmem:[#allocation7 + $0xe4] sm:$0xf] %v860
    %925 = vst [vmem:[#allocation7 + $0xe8] sm:$0xf] %v861
    %926 = vst [vmem:[#allocation7 + $0xec] sm:$0xf] %v862
    %927 = vst [vmem:[#allocation7 + $0xf0] sm:$0xf] %v863
    %928 = vst [vmem:[#allocation7 + $0xf4] sm:$0xf] %v864
    %929 = vst [vmem:[#allocation7 + $0xf8] sm:$0xf] %v865
    %930 = vst [vmem:[#allocation7 + $0xfc] sm:$0xf] %v866
    // Predicated region
    $region26: #{tpu_custom_call.1} parent=1 // pred_check
      _
    $region27: #{tpu_custom_call.1} parent=1 // pred_check_branch
      %932 = sbr.rel (0) target = $region29
    $region28: #{tpu_custom_call.1} parent=1 // pred_region
      %934 = vsyncadd [#allocation4], 0
      %s935 = sshll.u32 [#allocation7], 4
      %s936 = int_to_ptr.vmem [resolvable:$true] %s935
      %s937 = sshll.u32 %s4, 4
      %s938 = int_to_ptr.hbm [resolvable:$true] %s937
      %943 = dma.vmem_to_hbm [thread:$0]  %s936, 4096, %s938, [#allocation4], 64, 64, 4
    $region29: #{tpu_custom_call.1} parent=1 // pred_fallthru
      _
    // Predicated region
    $region30: #{tpu_custom_call.1} parent=1 // pred_check
      _
    $region31: #{tpu_custom_call.1} parent=1 // pred_check_branch
      %945 = sbr.rel (0) target = $region33
    $region32: #{tpu_custom_call.1} parent=1 // pred_region
      %947 = dma.done [#allocation4], 4096
    $region33: #{tpu_custom_call.1} parent=1 // pred_fallthru
      _
    %948 = vsyncpa [#allocation3], 1
    %949 = vsyncpa [#allocation6], 1
    %950 = vsyncpa [#allocation4], 1

</llo_original>
